<compile_context>
chip_gen: v6e
topology: v6e:2x2x1
jax: 0.10.0
libtpu: 0.0.40
codegen_flags: <defaults>
</compile_context>

<pallas_src>
import functools

import jax
import jax.numpy as jnp
from jax import lax
from jax.experimental import pallas as pl
from jax.experimental.pallas import tpu as pltpu


def _embed_ln_kernel(ids_ref, w_hbm, pos_ref, g_ref, b_ref, o_ref, wbuf, sem,
                     *, eps, block_tokens, chunk):
    """One grid step: chunked/pipelined gather of `block_tokens` word rows, add pos, LayerNorm."""
    base = pl.program_id(0) * block_tokens
    n_chunks = block_tokens // chunk

    def issue(c):
        # All token ids of the chunk are read from SMEM here (before any .wait() runs) and all
        # row DMAs of the chunk signal the same semaphore sem[c & 1].
        s = sem.at[c & 1]
        for t in range(chunk):                      # fully unrolled: static rows, visible to LLO
            row = c * chunk + t
            tok = ids_ref[base + row]               # token id from SMEM (scalar prefetch)
            pltpu.make_async_copy(
                w_hbm.at[pl.ds(tok, 1)],            # (1, H) row of the HBM embedding table
                wbuf.at[pl.ds(row, 1)],             # (1, H) row of the VMEM gather buffer
                s,
            ).start()

    # Hoisted out of the chunk loop (JAX does not CSE broadcasts).
    gamma = g_ref[...].astype(jnp.float32)
    beta = b_ref[...].astype(jnp.float32)

    issue(0)
    for c in range(n_chunks):                       # static loop: all indices compile-time aligned
        if c + 1 < n_chunks:
            issue(c + 1)                            # overlap next chunk's gather with this LN

        lo = c * chunk
        # Aggregate wait: one descriptor covering the whole (chunk, H) destination slice; its
        # byte count equals the sum of the chunk's row copies signalled on sem[c & 1].
        pltpu.make_async_copy(
            w_hbm.at[pl.ds(0, chunk)],
            wbuf.at[pl.ds(lo, chunk)],
            sem.at[c & 1],
        ).wait()

        x = wbuf[pl.ds(lo, chunk), :].astype(jnp.float32) \
            + pos_ref[pl.ds(lo, chunk), :].astype(jnp.float32)
        mean = jnp.mean(x, axis=-1, keepdims=True)
        xc = x - mean
        var = jnp.mean(xc * xc, axis=-1, keepdims=True)   # biased variance (PyTorch LayerNorm)
        inv = lax.rsqrt(var + eps)                        # EUP transcendental (free slot)
        y = xc * inv * gamma + beta
        o_ref[pl.ds(lo, chunk), :] = y.astype(o_ref.dtype)


def _block_vmem_bytes(tokens, hidden, w_itemsize, p_itemsize):
    # wbuf + (conservatively double-buffered) pos slab + double-buffered f32 output block.
    return tokens * hidden * (w_itemsize + 2 * p_itemsize + 2 * 4)


def _pick_rows_per_block(B, S, H, w_itemsize, p_itemsize,
                         max_tokens=1024, vmem_budget_bytes=20 << 20):
    """Pick R = sequences per grid step s.t. T = R*S is tile-aligned and VMEM-bounded, preferring
    an even grid of >= 2 steps (megacore on v7x)."""
    candidates = []
    for r in range(1, B + 1):
        if B % r:
            continue
        t, nb = r * S, B // r
        if nb > 1 and t % 8 != 0:        # (8,128) sublane rule unless the block is the full array
            continue
        if t > max_tokens or _block_vmem_bytes(t, H, w_itemsize, p_itemsize) > vmem_budget_bytes:
            continue
        candidates.append((r, t, nb))
    if candidates:
        even = [c for c in candidates if c[2] >= 2 and c[2] % 2 == 0]
        pool = even if even else candidates
        return max(pool, key=lambda c: c[1])[0]     # biggest block within budget
    # Fallback: smallest legal block (one sequence when alignment allows, else the full array).
    # TODO(synk): shapes whose smallest legal block still exceeds the VMEM budget (huge S*H with
    # S not a multiple of 8) are not tiled below sequence granularity here.
    return 1 if (B == 1 or S % 8 == 0) else B


def _pick_chunk(tokens, max_chunk=64):
    """Rows per pipelined gather stage: a multiple of 8 dividing T, <= max_chunk, preferring
    >= 2 chunks so chunk c+1's gather overlaps chunk c's LayerNorm."""
    divs = [d for d in range(8, min(tokens, max_chunk) + 1, 8) if tokens % d == 0]
    if not divs:
        return tokens
    overlapping = [d for d in divs if d <= tokens // 2]
    return max(overlapping) if overlapping else max(divs)


def decoder_embeddings(input_ids, word_emb, pos_emb, gamma, beta, *, eps=1e-12):
    """Pallas implementation of DecoderEmbeddings.forward (eval mode: dropout p=0)."""
    B, S = input_ids.shape
    V, H = word_emb.shape
    P = pos_emb.shape[0]
    assert S <= P, f"sequence length {S} exceeds max_target_embeddings {P}"

    w_item = jnp.dtype(word_emb.dtype).itemsize
    p_item = jnp.dtype(pos_emb.dtype).itemsize
    R = _pick_rows_per_block(B, S, H, w_item, p_item)
    T = R * S                       # tokens per grid step
    NB = (B * S) // T               # grid size (R divides B exactly)
    CH = _pick_chunk(T)             # rows per pipelined gather chunk (divides T)

    # Clip ids so a bad token id can never issue an out-of-bounds HBM DMA.
    ids_flat = jnp.clip(input_ids.reshape(-1).astype(jnp.int32), 0, V - 1)
    pos_slab = jnp.tile(pos_emb[:S], (R, 1))                    # (T, H), VMEM-resident

    block_vmem = _block_vmem_bytes(T, H, w_item, p_item) + 4 * H * 4   # + gamma/beta
    vmem_limit = int(min(max(2 * block_vmem + (4 << 20), 16 << 20), 48 << 20))

    kernel = functools.partial(_embed_ln_kernel, eps=eps, block_tokens=T, chunk=CH)

    out = pl.pallas_call(
        kernel,
        out_shape=jax.ShapeDtypeStruct((B * S, H), jnp.float32),
        grid_spec=pltpu.PrefetchScalarGridSpec(
            num_scalar_prefetch=1,
            grid=(NB,),
            in_specs=[
                pl.BlockSpec(memory_space=pl.ANY),              # word_emb table: raw HBM ref
                pl.BlockSpec((T, H), lambda i, ids: (0, 0)),    # position slab (resident)
                pl.BlockSpec((1, H), lambda i, ids: (0, 0)),    # LayerNorm gamma (resident)
                pl.BlockSpec((1, H), lambda i, ids: (0, 0)),    # LayerNorm beta  (resident)
            ],
            out_specs=pl.BlockSpec((T, H), lambda i, ids: (i, 0)),
            scratch_shapes=[
                pltpu.VMEM((T, H), word_emb.dtype),             # gathered word rows
                pltpu.SemaphoreType.DMA((2,)),                  # parity pair of shared DMA sems
            ],
        ),
        compiler_params=pltpu.CompilerParams(
            dimension_semantics=("parallel",),                  # each step is self-contained
            vmem_limit_bytes=vmem_limit),
    )(ids_flat, word_emb, pos_slab, gamma.reshape(1, H), beta.reshape(1, H))

    return out.reshape(B, S, H)


def _reference(input_ids, word_emb, pos_emb, gamma, beta, eps=1e-12):
    B, S = input_ids.shape
    pos_ids = jnp.broadcast_to(jnp.arange(S, dtype=jnp.int32)[None, :], (B, S))
    x = word_emb[input_ids] + pos_emb[pos_ids]
    mean = jnp.mean(x, axis=-1, keepdims=True)
    var = jnp.mean((x - mean) ** 2, axis=-1, keepdims=True)
    return (x - mean) / jnp.sqrt(var + eps) * gamma + beta


if __name__ == "__main__":
    # Small, deterministic config:
    #   vocab_size=64, max_target_embeddings=32, hidden_size=32, batch=2, seq=8
    B, S, V, P, H = 2, 8, 64, 32, 32

    key = jax.random.PRNGKey(0)
    k_ids, k_w, k_p, k_g, k_b = jax.random.split(key, 5)

    input_ids = jax.random.randint(k_ids, (B, S), 0, V, dtype=jnp.int32)
    word_emb = 0.02 * jax.random.normal(k_w, (V, H), dtype=jnp.float32)
    pos_emb = 0.02 * jax.random.normal(k_p, (P, H), dtype=jnp.float32)
    gamma = jnp.ones((H,), jnp.float32) + 0.1 * jax.random.normal(k_g, (H,), jnp.float32)
    beta = 0.1 * jax.random.normal(k_b, (H,), jnp.float32)

    out = decoder_embeddings(input_ids, word_emb, pos_emb, gamma, beta)
    out = jax.block_until_ready(out)

    ref = _reference(input_ids, word_emb, pos_emb, gamma, beta)
    assert out.shape == (B, S, H), out.shape
    assert jnp.allclose(out, ref, atol=1e-5, rtol=1e-5), float(jnp.max(jnp.abs(out - ref)))

    print("KERNEL_OK")
</pallas_src>

<mosaic_0001>
module attributes {stable_mosaic.version = 11 : i64} {
  func.func @_embed_ln_kernel(%arg0: i32, %arg1: memref<16xi32, #tpu.memory_space<smem>>, %arg2: memref<64x32xf32, #tpu.memory_space<any>>, %arg3: memref<8x32xf32, #tpu.memory_space<vmem>>, %arg4: memref<1x32xf32, #tpu.memory_space<vmem>>, %arg5: memref<1x32xf32, #tpu.memory_space<vmem>>, %arg6: memref<8x32xf32, #tpu.memory_space<vmem>>, %arg7: memref<8x32xf32, #tpu.memory_space<vmem>>, %arg8: memref<2x!tpu.dma_semaphore, #tpu.memory_space<semaphore_mem>>) attributes {dimension_semantics = [#tpu.dimension_semantics<parallel>], iteration_bounds = array<i64: 2>, scalar_prefetch = 1 : i64, scratch_operands = 2 : i64, tpu.core_type = #tpu.core_type<tc>, window_params = [{}, {pipeline_mode = #tpu.pipeline_mode<synchronous>, transform_indices = @transform_1, window_bounds = array<i64: 8, 32>}, {pipeline_mode = #tpu.pipeline_mode<synchronous>, transform_indices = @transform_2, window_bounds = array<i64: 1, 32>}, {pipeline_mode = #tpu.pipeline_mode<synchronous>, transform_indices = @transform_3, window_bounds = array<i64: 1, 32>}, {transform_indices = @transform_4, window_bounds = array<i64: 8, 32>}]} {
    %c8_i32 = arith.constant 8 : i32
    %0 = arith.muli %arg0, %c8_i32 : i32
    %c0 = arith.constant 0 : index
    %c0_0 = arith.constant 0 : index
    %1 = vector.load %arg4[%c0, %c0_0] : memref<1x32xf32, #tpu.memory_space<vmem>>, vector<1x32xf32>
    %c0_1 = arith.constant 0 : index
    %c0_2 = arith.constant 0 : index
    %2 = vector.load %arg5[%c0_1, %c0_2] : memref<1x32xf32, #tpu.memory_space<vmem>>, vector<1x32xf32>
    %c0_i32 = arith.constant 0 : i32
    %3 = arith.addi %0, %c0_i32 : i32
    %4 = arith.index_cast %3 : i32 to index
    %5 = memref.load %arg1[%4] : memref<16xi32, #tpu.memory_space<smem>>
    %c0_i32_3 = arith.constant 0 : i32
    %c0_i32_4 = arith.constant 0 : i32
    %6 = tpu.memref_slice %arg2[%5, %c0_i32_4] : memref<64x32xf32, #tpu.memory_space<any>> -> memref<1x32xf32, #tpu.memory_space<any>>
    %c0_i32_5 = arith.constant 0 : i32
    %c0_i32_6 = arith.constant 0 : i32
    %7 = tpu.memref_slice %arg7[%c0_i32_5, %c0_i32_6] : memref<8x32xf32, #tpu.memory_space<vmem>> -> memref<1x32xf32, #tpu.memory_space<vmem>>
    %8 = tpu.memref_slice %arg8[%c0_i32_3] : memref<2x!tpu.dma_semaphore, #tpu.memory_space<semaphore_mem>> -> memref<1x!tpu.dma_semaphore, #tpu.memory_space<semaphore_mem>>
    %9 = tpu.memref_squeeze %8 : memref<1x!tpu.dma_semaphore, #tpu.memory_space<semaphore_mem>> -> memref<!tpu.dma_semaphore, #tpu.memory_space<semaphore_mem>>
    tpu.enqueue_dma source(%6 : memref<1x32xf32, #tpu.memory_space<any>>) target(%7 : memref<1x32xf32, #tpu.memory_space<vmem>>) target_semaphore(%9 : memref<!tpu.dma_semaphore, #tpu.memory_space<semaphore_mem>>)
    %c1_i32 = arith.constant 1 : i32
    %10 = arith.addi %0, %c1_i32 : i32
    %11 = arith.index_cast %10 : i32 to index
    %12 = memref.load %arg1[%11] : memref<16xi32, #tpu.memory_space<smem>>
    %c0_i32_7 = arith.constant 0 : i32
    %c0_i32_8 = arith.constant 0 : i32
    %13 = tpu.memref_slice %arg2[%12, %c0_i32_8] : memref<64x32xf32, #tpu.memory_space<any>> -> memref<1x32xf32, #tpu.memory_space<any>>
    %c1_i32_9 = arith.constant 1 : i32
    %c0_i32_10 = arith.constant 0 : i32
    %14 = tpu.memref_slice %arg7[%c1_i32_9, %c0_i32_10] : memref<8x32xf32, #tpu.memory_space<vmem>> -> memref<1x32xf32, #tpu.memory_space<vmem>>
    %15 = tpu.memref_slice %arg8[%c0_i32_7] : memref<2x!tpu.dma_semaphore, #tpu.memory_space<semaphore_mem>> -> memref<1x!tpu.dma_semaphore, #tpu.memory_space<semaphore_mem>>
    %16 = tpu.memref_squeeze %15 : memref<1x!tpu.dma_semaphore, #tpu.memory_space<semaphore_mem>> -> memref<!tpu.dma_semaphore, #tpu.memory_space<semaphore_mem>>
    tpu.enqueue_dma source(%13 : memref<1x32xf32, #tpu.memory_space<any>>) target(%14 : memref<1x32xf32, #tpu.memory_space<vmem>>) target_semaphore(%16 : memref<!tpu.dma_semaphore, #tpu.memory_space<semaphore_mem>>)
    %c2_i32 = arith.constant 2 : i32
    %17 = arith.addi %0, %c2_i32 : i32
    %18 = arith.index_cast %17 : i32 to index
    %19 = memref.load %arg1[%18] : memref<16xi32, #tpu.memory_space<smem>>
    %c0_i32_11 = arith.constant 0 : i32
    %c0_i32_12 = arith.constant 0 : i32
    %20 = tpu.memref_slice %arg2[%19, %c0_i32_12] : memref<64x32xf32, #tpu.memory_space<any>> -> memref<1x32xf32, #tpu.memory_space<any>>
    %c2_i32_13 = arith.constant 2 : i32
    %c0_i32_14 = arith.constant 0 : i32
    %21 = tpu.memref_slice %arg7[%c2_i32_13, %c0_i32_14] : memref<8x32xf32, #tpu.memory_space<vmem>> -> memref<1x32xf32, #tpu.memory_space<vmem>>
    %22 = tpu.memref_slice %arg8[%c0_i32_11] : memref<2x!tpu.dma_semaphore, #tpu.memory_space<semaphore_mem>> -> memref<1x!tpu.dma_semaphore, #tpu.memory_space<semaphore_mem>>
    %23 = tpu.memref_squeeze %22 : memref<1x!tpu.dma_semaphore, #tpu.memory_space<semaphore_mem>> -> memref<!tpu.dma_semaphore, #tpu.memory_space<semaphore_mem>>
    tpu.enqueue_dma source(%20 : memref<1x32xf32, #tpu.memory_space<any>>) target(%21 : memref<1x32xf32, #tpu.memory_space<vmem>>) target_semaphore(%23 : memref<!tpu.dma_semaphore, #tpu.memory_space<semaphore_mem>>)
    %c3_i32 = arith.constant 3 : i32
    %24 = arith.addi %0, %c3_i32 : i32
    %25 = arith.index_cast %24 : i32 to index
    %26 = memref.load %arg1[%25] : memref<16xi32, #tpu.memory_space<smem>>
    %c0_i32_15 = arith.constant 0 : i32
    %c0_i32_16 = arith.constant 0 : i32
    %27 = tpu.memref_slice %arg2[%26, %c0_i32_16] : memref<64x32xf32, #tpu.memory_space<any>> -> memref<1x32xf32, #tpu.memory_space<any>>
    %c3_i32_17 = arith.constant 3 : i32
    %c0_i32_18 = arith.constant 0 : i32
    %28 = tpu.memref_slice %arg7[%c3_i32_17, %c0_i32_18] : memref<8x32xf32, #tpu.memory_space<vmem>> -> memref<1x32xf32, #tpu.memory_space<vmem>>
    %29 = tpu.memref_slice %arg8[%c0_i32_15] : memref<2x!tpu.dma_semaphore, #tpu.memory_space<semaphore_mem>> -> memref<1x!tpu.dma_semaphore, #tpu.memory_space<semaphore_mem>>
    %30 = tpu.memref_squeeze %29 : memref<1x!tpu.dma_semaphore, #tpu.memory_space<semaphore_mem>> -> memref<!tpu.dma_semaphore, #tpu.memory_space<semaphore_mem>>
    tpu.enqueue_dma source(%27 : memref<1x32xf32, #tpu.memory_space<any>>) target(%28 : memref<1x32xf32, #tpu.memory_space<vmem>>) target_semaphore(%30 : memref<!tpu.dma_semaphore, #tpu.memory_space<semaphore_mem>>)
    %c4_i32 = arith.constant 4 : i32
    %31 = arith.addi %0, %c4_i32 : i32
    %32 = arith.index_cast %31 : i32 to index
    %33 = memref.load %arg1[%32] : memref<16xi32, #tpu.memory_space<smem>>
    %c0_i32_19 = arith.constant 0 : i32
    %c0_i32_20 = arith.constant 0 : i32
    %34 = tpu.memref_slice %arg2[%33, %c0_i32_20] : memref<64x32xf32, #tpu.memory_space<any>> -> memref<1x32xf32, #tpu.memory_space<any>>
    %c4_i32_21 = arith.constant 4 : i32
    %c0_i32_22 = arith.constant 0 : i32
    %35 = tpu.memref_slice %arg7[%c4_i32_21, %c0_i32_22] : memref<8x32xf32, #tpu.memory_space<vmem>> -> memref<1x32xf32, #tpu.memory_space<vmem>>
    %36 = tpu.memref_slice %arg8[%c0_i32_19] : memref<2x!tpu.dma_semaphore, #tpu.memory_space<semaphore_mem>> -> memref<1x!tpu.dma_semaphore, #tpu.memory_space<semaphore_mem>>
    %37 = tpu.memref_squeeze %36 : memref<1x!tpu.dma_semaphore, #tpu.memory_space<semaphore_mem>> -> memref<!tpu.dma_semaphore, #tpu.memory_space<semaphore_mem>>
    tpu.enqueue_dma source(%34 : memref<1x32xf32, #tpu.memory_space<any>>) target(%35 : memref<1x32xf32, #tpu.memory_space<vmem>>) target_semaphore(%37 : memref<!tpu.dma_semaphore, #tpu.memory_space<semaphore_mem>>)
    %c5_i32 = arith.constant 5 : i32
    %38 = arith.addi %0, %c5_i32 : i32
    %39 = arith.index_cast %38 : i32 to index
    %40 = memref.load %arg1[%39] : memref<16xi32, #tpu.memory_space<smem>>
    %c0_i32_23 = arith.constant 0 : i32
    %c0_i32_24 = arith.constant 0 : i32
    %41 = tpu.memref_slice %arg2[%40, %c0_i32_24] : memref<64x32xf32, #tpu.memory_space<any>> -> memref<1x32xf32, #tpu.memory_space<any>>
    %c5_i32_25 = arith.constant 5 : i32
    %c0_i32_26 = arith.constant 0 : i32
    %42 = tpu.memref_slice %arg7[%c5_i32_25, %c0_i32_26] : memref<8x32xf32, #tpu.memory_space<vmem>> -> memref<1x32xf32, #tpu.memory_space<vmem>>
    %43 = tpu.memref_slice %arg8[%c0_i32_23] : memref<2x!tpu.dma_semaphore, #tpu.memory_space<semaphore_mem>> -> memref<1x!tpu.dma_semaphore, #tpu.memory_space<semaphore_mem>>
    %44 = tpu.memref_squeeze %43 : memref<1x!tpu.dma_semaphore, #tpu.memory_space<semaphore_mem>> -> memref<!tpu.dma_semaphore, #tpu.memory_space<semaphore_mem>>
    tpu.enqueue_dma source(%41 : memref<1x32xf32, #tpu.memory_space<any>>) target(%42 : memref<1x32xf32, #tpu.memory_space<vmem>>) target_semaphore(%44 : memref<!tpu.dma_semaphore, #tpu.memory_space<semaphore_mem>>)
    %c6_i32 = arith.constant 6 : i32
    %45 = arith.addi %0, %c6_i32 : i32
    %46 = arith.index_cast %45 : i32 to index
    %47 = memref.load %arg1[%46] : memref<16xi32, #tpu.memory_space<smem>>
    %c0_i32_27 = arith.constant 0 : i32
    %c0_i32_28 = arith.constant 0 : i32
    %48 = tpu.memref_slice %arg2[%47, %c0_i32_28] : memref<64x32xf32, #tpu.memory_space<any>> -> memref<1x32xf32, #tpu.memory_space<any>>
    %c6_i32_29 = arith.constant 6 : i32
    %c0_i32_30 = arith.constant 0 : i32
    %49 = tpu.memref_slice %arg7[%c6_i32_29, %c0_i32_30] : memref<8x32xf32, #tpu.memory_space<vmem>> -> memref<1x32xf32, #tpu.memory_space<vmem>>
    %50 = tpu.memref_slice %arg8[%c0_i32_27] : memref<2x!tpu.dma_semaphore, #tpu.memory_space<semaphore_mem>> -> memref<1x!tpu.dma_semaphore, #tpu.memory_space<semaphore_mem>>
    %51 = tpu.memref_squeeze %50 : memref<1x!tpu.dma_semaphore, #tpu.memory_space<semaphore_mem>> -> memref<!tpu.dma_semaphore, #tpu.memory_space<semaphore_mem>>
    tpu.enqueue_dma source(%48 : memref<1x32xf32, #tpu.memory_space<any>>) target(%49 : memref<1x32xf32, #tpu.memory_space<vmem>>) target_semaphore(%51 : memref<!tpu.dma_semaphore, #tpu.memory_space<semaphore_mem>>)
    %c7_i32 = arith.constant 7 : i32
    %52 = arith.addi %0, %c7_i32 : i32
    %53 = arith.index_cast %52 : i32 to index
    %54 = memref.load %arg1[%53] : memref<16xi32, #tpu.memory_space<smem>>
    %c0_i32_31 = arith.constant 0 : i32
    %c0_i32_32 = arith.constant 0 : i32
    %55 = tpu.memref_slice %arg2[%54, %c0_i32_32] : memref<64x32xf32, #tpu.memory_space<any>> -> memref<1x32xf32, #tpu.memory_space<any>>
    %c7_i32_33 = arith.constant 7 : i32
    %c0_i32_34 = arith.constant 0 : i32
    %56 = tpu.memref_slice %arg7[%c7_i32_33, %c0_i32_34] : memref<8x32xf32, #tpu.memory_space<vmem>> -> memref<1x32xf32, #tpu.memory_space<vmem>>
    %57 = tpu.memref_slice %arg8[%c0_i32_31] : memref<2x!tpu.dma_semaphore, #tpu.memory_space<semaphore_mem>> -> memref<1x!tpu.dma_semaphore, #tpu.memory_space<semaphore_mem>>
    %58 = tpu.memref_squeeze %57 : memref<1x!tpu.dma_semaphore, #tpu.memory_space<semaphore_mem>> -> memref<!tpu.dma_semaphore, #tpu.memory_space<semaphore_mem>>
    tpu.enqueue_dma source(%55 : memref<1x32xf32, #tpu.memory_space<any>>) target(%56 : memref<1x32xf32, #tpu.memory_space<vmem>>) target_semaphore(%58 : memref<!tpu.dma_semaphore, #tpu.memory_space<semaphore_mem>>)
    %c0_i32_35 = arith.constant 0 : i32
    %c0_i32_36 = arith.constant 0 : i32
    %c0_i32_37 = arith.constant 0 : i32
    %59 = tpu.memref_slice %arg2[%c0_i32_36, %c0_i32_37] : memref<64x32xf32, #tpu.memory_space<any>> -> memref<8x32xf32, #tpu.memory_space<any>>
    %c0_i32_38 = arith.constant 0 : i32
    %c0_i32_39 = arith.constant 0 : i32
    %60 = tpu.memref_slice %arg7[%c0_i32_38, %c0_i32_39] : memref<8x32xf32, #tpu.memory_space<vmem>> -> memref<8x32xf32, #tpu.memory_space<vmem>>
    %61 = tpu.memref_slice %arg8[%c0_i32_35] : memref<2x!tpu.dma_semaphore, #tpu.memory_space<semaphore_mem>> -> memref<1x!tpu.dma_semaphore, #tpu.memory_space<semaphore_mem>>
    %62 = tpu.memref_squeeze %61 : memref<1x!tpu.dma_semaphore, #tpu.memory_space<semaphore_mem>> -> memref<!tpu.dma_semaphore, #tpu.memory_space<semaphore_mem>>
    tpu.wait_dma2 semaphore(%62 : memref<!tpu.dma_semaphore, #tpu.memory_space<semaphore_mem>>) src(%59 : memref<8x32xf32, #tpu.memory_space<any>>) dst(%60 : memref<8x32xf32, #tpu.memory_space<vmem>>)
    %c0_40 = arith.constant 0 : index
    %c0_41 = arith.constant 0 : index
    %63 = vector.load %arg7[%c0_40, %c0_41] : memref<8x32xf32, #tpu.memory_space<vmem>>, vector<8x32xf32>
    %c0_42 = arith.constant 0 : index
    %c0_43 = arith.constant 0 : index
    %64 = vector.load %arg3[%c0_42, %c0_43] : memref<8x32xf32, #tpu.memory_space<vmem>>, vector<8x32xf32>
    %65 = arith.addf %63, %64 : vector<8x32xf32>
    %cst = arith.constant dense<0.000000e+00> : vector<8xf32>
    %66 = vector.multi_reduction <add>, %65, %cst [1] : vector<8x32xf32> to vector<8xf32>
    %67 = vector.shape_cast %66 : vector<8xf32> to vector<8x1xf32>
    %cst_44 = arith.constant 3.200000e+01 : f32
    %68 = vector.broadcast %cst_44 : f32 to vector<8x1xf32>
    %69 = arith.divf %67, %68 : vector<8x1xf32>
    %70 = vector.broadcast %69 : vector<8x1xf32> to vector<8x32xf32>
    %71 = arith.subf %65, %70 : vector<8x32xf32>
    %72 = arith.mulf %71, %71 : vector<8x32xf32>
    %cst_45 = arith.constant dense<0.000000e+00> : vector<8xf32>
    %73 = vector.multi_reduction <add>, %72, %cst_45 [1] : vector<8x32xf32> to vector<8xf32>
    %74 = vector.shape_cast %73 : vector<8xf32> to vector<8x1xf32>
    %cst_46 = arith.constant 3.200000e+01 : f32
    %75 = vector.broadcast %cst_46 : f32 to vector<8x1xf32>
    %76 = arith.divf %74, %75 : vector<8x1xf32>
    %cst_47 = arith.constant 9.99999996E-13 : f32
    %77 = vector.broadcast %cst_47 : f32 to vector<8x1xf32>
    %78 = arith.addf %76, %77 : vector<8x1xf32>
    %79 = math.rsqrt %78 : vector<8x1xf32>
    %80 = vector.broadcast %79 : vector<8x1xf32> to vector<8x32xf32>
    %81 = arith.mulf %71, %80 : vector<8x32xf32>
    %82 = vector.broadcast %1 : vector<1x32xf32> to vector<8x32xf32>
    %83 = arith.mulf %81, %82 : vector<8x32xf32>
    %84 = vector.broadcast %2 : vector<1x32xf32> to vector<8x32xf32>
    %85 = arith.addf %83, %84 : vector<8x32xf32>
    %c0_48 = arith.constant 0 : index
    %c0_49 = arith.constant 0 : index
    %86 = vector.load %arg6[%c0_48, %c0_49] : memref<8x32xf32, #tpu.memory_space<vmem>>, vector<8x32xf32>
    tpu.vector_store %arg6[%c0_48, %c0_49], %85 {strides = array<i32>} : memref<8x32xf32, #tpu.memory_space<vmem>>, vector<8x32xf32>,
    return
  }
  func.func @transform_1(%arg0: i32, %arg1: memref<16xi32, #tpu.memory_space<smem>>) -> (i32, i32) {
    %c0_i32 = arith.constant 0 : i32
    %c0_i32_0 = arith.constant 0 : i32
    %c0_i32_1 = arith.constant 0 : i32
    return %c0_i32, %c0_i32_0 : i32, i32
  }
  func.func @transform_2(%arg0: i32, %arg1: memref<16xi32, #tpu.memory_space<smem>>) -> (i32, i32) {
    %c0_i32 = arith.constant 0 : i32
    %c0_i32_0 = arith.constant 0 : i32
    %c0_i32_1 = arith.constant 0 : i32
    return %c0_i32, %c0_i32_0 : i32, i32
  }
  func.func @transform_3(%arg0: i32, %arg1: memref<16xi32, #tpu.memory_space<smem>>) -> (i32, i32) {
    %c0_i32 = arith.constant 0 : i32
    %c0_i32_0 = arith.constant 0 : i32
    %c0_i32_1 = arith.constant 0 : i32
    return %c0_i32, %c0_i32_0 : i32, i32
  }
  func.func @transform_4(%arg0: i32, %arg1: memref<16xi32, #tpu.memory_space<smem>>) -> (i32, i32) {
    %c0_i32 = arith.constant 0 : i32
    %c0_i32_0 = arith.constant 0 : i32
    return %arg0, %c0_i32 : i32, i32
  }
}

</mosaic_0001>

<llo_original>
// kernel: tpu_custom_call.1
$region0: #{tpu_custom_call.1}
  #allocation0 [shape = 'u32[]', space=smem, size = 0x4, offset = 0x4, fixed_abs, tag = 'smem constant byte address 0x4 - core index']
  #allocation1 [shape = 'u32[144,128]{1,0:T(1,128)}', space=vmem, size = 0x12000, scoped, tag = 'internal scratch']
  #allocation2 [shape = 'f32[8,32]{1,0:T(8,128)}', space=vmem, size = 0x1000, scoped, tag = 'scratch operand']
  #allocation3 [shape = 's32[2]{0}', space=sflag, size = 0x8, scoped, tag = 'scratch operand']
  #allocation4 [shape = 's32[1]{0}', space=sflag, size = 0x4, scoped, tag = 'scoped memory for tpu_custom_call.1']
  #allocation5 [shape = 'u8[512]{0}', space=smem, size = 0x200, scoped, tag = 'prefetched SMEM operand 0']
  #allocation8 [shape = 's32[]', space=sflag, size = 0x4, offset = 0, fixed_abs, tag = 'sflag constant byte address 0x0 - dummy sync flag']
  #allocation9 [shape = 's32[]', space=sflag, size = 0x4, offset = 0, fixed_abs, tag = 'sflag constant byte address 0x0 - dummy sync flag']
  #allocation10 [shape = 's32[]', space=sflag, size = 0x4, offset = 0, fixed_abs, tag = 'sflag constant byte address 0x0 - dummy sync flag']
  #allocation11 [shape = 's32[]', space=sflag, size = 0x4, offset = 0, fixed_abs, tag = 'sflag constant byte address 0x0 - dummy sync flag']
  #allocation12 [shape = 's32[]', space=sflag, size = 0x4, offset = 0, fixed_abs, tag = 'sflag constant byte address 0x0 - dummy sync flag']
  #allocation13 [shape = 's32[]', space=sflag, size = 0x4, offset = 0, fixed_abs, tag = 'sflag constant byte address 0x0 - dummy sync flag']
  #allocation14 [shape = 's32[]', space=sflag, size = 0x4, offset = 0, fixed_abs, tag = 'sflag constant byte address 0x0 - dummy sync flag']
  #allocation15 [shape = 's32[]', space=sflag, size = 0x4, offset = 0, fixed_abs, tag = 'sflag constant byte address 0x0 - dummy sync flag']
  %s0 = inlined_call_operand.vmem [shape: s32[16], index: 0, kind: input, shape index: {}]
  %s1 = inlined_call_operand.vmem [shape: f32[64,32], index: 1, kind: input, shape index: {}]
  %s2 = inlined_call_operand.vmem [shape: f32[8,32], index: 2, kind: input, shape index: {}]
  %s3 = inlined_call_operand.vmem [shape: f32[1,32], index: 3, kind: input, shape index: {}]
  %s4 = inlined_call_operand.vmem [shape: f32[1,32], index: 4, kind: input, shape index: {}]
  %s5 = inlined_call_operand.hbm [shape: f32[16,32], index: 5, kind: output, shape index: {}]
  %s6 = sld [smem:[#allocation0]]
  $region285: #{tpu_custom_call.1} parent=0
    _
  %s8 = ssub.s32 1, %s6
  %s9 = scalar_select 0, %s8, %s6
  %s10 = sshll.u32 %s0, 4
  %s11 = int_to_ptr.vmem [resolvable:$true] %s10
  %13 = dma.vmem_to_smem %s11, 16, [#allocation5], [#allocation4]
  %14 = dma.done [#allocation4], 16
  %15 = sfence
  $region1: #{tpu_custom_call.1} parent=0
    #allocation6 [shape = 'u8[8192]{0}', space=vmem, size = 0x2000, scoped, tag = 'output window, operand 0']
    #allocation7 [shape = 's32[2]{0}', space=sflag, size = 0x8, scoped, tag = 'scoped memory for tpu_custom_call.1']
    %16 = vsyncpa [#allocation7], 0
    %s17 = scalar_lea.sflag [#allocation7], 1
    %18 = vsyncpa %s17, 0
    loop: start=0, step=1, limit=4
    $region2: #{tpu_custom_call.1} parent=1 // loop_pre_header
      _
    $region3: #{tpu_custom_call.1} parent=1 // loop_header
      %s20 = sphi 0, %s24
      %p21 = scmp.ge.s32.totalorder %s20, 4
      %s28 = sphi 0, %s28
      %s30 = sphi 0, %s28
      %s31 = sphi 0, %s30
      %s45 = sphi 0, %s31
      %s49 = sphi 0, %s49
      %s51 = sphi 0, %s49
      %s52 = sphi 0, %s51
      %s66 = sphi 0, %s52
      %s70 = sphi 0, %s70
      %s72 = sphi 0, %s70
      %s73 = sphi 0, %s72
      %s87 = sphi 0, %s73
      %s93 = sphi 0, %s95
      %s96 = sphi 0, %s93
      %s97 = sphi 0, %s96
      %s113 = sphi 0, %s97
    $region4: #{tpu_custom_call.1} parent=1 // loop_header_branch
      %23 = sbr.rel (%p21) target = $region8
    $region5: #{tpu_custom_call.1} parent=1 // loop_body
      %s25 = ssub.s32 %s20, 1
      %s26 = ssub.s32 %s20, 2
      %s27 = sadd.s32 %s20, 1
      %s29 = sadd.s32 %s28, 1
      %p32 = scmp.eq.s32.totalorder %s20, 1
      %p33 = scmp.ne.s32.totalorder %s28, %s30
      %p34 = scmp.eq.s32.totalorder %s20, 0
      %p35 = por %p33, %p34
      %p36 = scmp.ne.s32.totalorder %s28, %s30
      %p37 = scmp.eq.s32.totalorder %s25, 1
      %p38 = por %p36, %p37
      %p39 = scmp.ne.s32.totalorder %s30, %s31
      %p40 = scmp.eq.s32.totalorder %s25, 0
      %p41 = por %p39, %p40
      %p42 = scmp.ne.s32.totalorder %s30, %s31
      %p43 = scmp.eq.s32.totalorder %s26, 1
      %p44 = por %p42, %p43
      %p46 = scmp.ne.s32.totalorder %s31, %s45
      %p47 = scmp.eq.s32.totalorder %s26, 0
      %p48 = por %p46, %p47
      %s50 = sadd.s32 %s49, 1
      %p53 = scmp.eq.s32.totalorder %s20, 1
      %p54 = scmp.ne.s32.totalorder %s49, %s51
      %p55 = scmp.eq.s32.totalorder %s20, 0
      %p56 = por %p54, %p55
      %p57 = scmp.ne.s32.totalorder %s49, %s51
      %p58 = scmp.eq.s32.totalorder %s25, 1
      %p59 = por %p57, %p58
      %p60 = scmp.ne.s32.totalorder %s51, %s52
      %p61 = scmp.eq.s32.totalorder %s25, 0
      %p62 = por %p60, %p61
      %p63 = scmp.ne.s32.totalorder %s51, %s52
      %p64 = scmp.eq.s32.totalorder %s26, 1
      %p65 = por %p63, %p64
      %p67 = scmp.ne.s32.totalorder %s52, %s66
      %p68 = scmp.eq.s32.totalorder %s26, 0
      %p69 = por %p67, %p68
      %s71 = sadd.s32 %s70, 1
      %p74 = scmp.eq.s32.totalorder %s20, 1
      %p75 = scmp.ne.s32.totalorder %s70, %s72
      %p76 = scmp.eq.s32.totalorder %s20, 0
      %p77 = por %p75, %p76
      %p78 = scmp.ne.s32.totalorder %s70, %s72
      %p79 = scmp.eq.s32.totalorder %s25, 1
      %p80 = por %p78, %p79
      %p81 = scmp.ne.s32.totalorder %s72, %s73
      %p82 = scmp.eq.s32.totalorder %s25, 0
      %p83 = por %p81, %p82
      %p84 = scmp.ne.s32.totalorder %s72, %s73
      %p85 = scmp.eq.s32.totalorder %s26, 1
      %p86 = por %p84, %p85
      %p88 = scmp.ne.s32.totalorder %s73, %s87
      %p89 = scmp.eq.s32.totalorder %s26, 0
      %p90 = por %p88, %p89
      %s91 = ssub.s32 %s20, %s27
      %p92 = scmp.eq.s32.totalorder %s91, 0
      %s94 = sadd.s32 %s93, 1
      %s95 = scalar_select %p92, %s93, %s94
      %p98 = pneg %p92
      %p99 = scmp.eq.s32.totalorder %s20, 1
      %p100 = por %p98, %p99
      %p101 = scmp.ne.s32.totalorder %s93, %s96
      %p102 = scmp.eq.s32.totalorder %s20, 0
      %p103 = por %p101, %p102
      %p104 = scmp.ne.s32.totalorder %s93, %s96
      %p105 = scmp.eq.s32.totalorder %s25, 1
      %p106 = por %p104, %p105
      %p107 = scmp.ne.s32.totalorder %s96, %s97
      %p108 = scmp.eq.s32.totalorder %s25, 0
      %p109 = por %p107, %p108
      %p110 = scmp.ne.s32.totalorder %s96, %s97
      %p111 = scmp.eq.s32.totalorder %s26, 1
      %p112 = por %p110, %p111
      %p114 = scmp.ne.s32.totalorder %s97, %s113
      %p115 = scmp.eq.s32.totalorder %s26, 0
      %p116 = por %p114, %p115
      %p117 = scmp.le.s32.totalorder 1, %s20
      %p118 = scmp.lt.s32.totalorder %s20, 3
      %p119 = pnand %p117, %p118
      %p120 = pneg %p119
      // Predicated region
      $region9: #{tpu_custom_call.1} parent=5 // pred_check
        _
      $region10: #{tpu_custom_call.1} parent=5 // pred_check_branch
        %122 = sbr.rel (%p119) target = $region12
      $region11: #{tpu_custom_call.1} parent=5 // pred_region
        %s123 = ssub.s32 %s20, 1
        // Predicated region
        $region13: #{tpu_custom_call.1} parent=11 // pred_check
          %p124 = pneg %p41
        $region14: #{tpu_custom_call.1} parent=11 // pred_check_branch
          %126 = sbr.rel (%p124) target = $region16
        $region15: #{tpu_custom_call.1} parent=11 // pred_region
          _
        $region16: #{tpu_custom_call.1} parent=11 // pred_fallthru
          _
        // Predicated region
        $region17: #{tpu_custom_call.1} parent=11 // pred_check
          %p127 = pneg %p62
        $region18: #{tpu_custom_call.1} parent=11 // pred_check_branch
          %129 = sbr.rel (%p127) target = $region20
        $region19: #{tpu_custom_call.1} parent=11 // pred_region
          _
        $region20: #{tpu_custom_call.1} parent=11 // pred_fallthru
          _
        // Predicated region
        $region21: #{tpu_custom_call.1} parent=11 // pred_check
          %p130 = pneg %p83
        $region22: #{tpu_custom_call.1} parent=11 // pred_check_branch
          %132 = sbr.rel (%p130) target = $region24
        $region23: #{tpu_custom_call.1} parent=11 // pred_region
          _
        $region24: #{tpu_custom_call.1} parent=11 // pred_fallthru
          _
      $region12: #{tpu_custom_call.1} parent=5 // pred_fallthru
        _
      %p133 = scmp.lt.s32.totalorder %s20, 2
      // Predicated region
      $region25: #{tpu_custom_call.1} parent=5 // pred_check
        %p134 = pneg %p133
      $region26: #{tpu_custom_call.1} parent=5 // pred_check_branch
        %136 = sbr.rel (%p134) target = $region28
      $region27: #{tpu_custom_call.1} parent=5 // pred_region
        _
      $region28: #{tpu_custom_call.1} parent=5 // pred_fallthru
        _
      %p137 = scmp.le.s32.totalorder 1, %s20
      %p138 = scmp.lt.s32.totalorder %s20, 3
      %p139 = pnand %p137, %p138
      %p140 = pneg %p139
      // Predicated region
      $region29: #{tpu_custom_call.1} parent=5 // pred_check
        _
      $region30: #{tpu_custom_call.1} parent=5 // pred_check_branch
        %142 = sbr.rel (%p139) target = $region32
      $region31: #{tpu_custom_call.1} parent=5 // pred_region
        %s143 = ssub.s32 %s20, 1
        %p144 = pneg %p41
        %p145 = pneg %p38
        %p146 = pneg %p62
        %p147 = pneg %p59
        %p148 = pneg %p83
        %p149 = pneg %p80
        %p150 = pneg %p109
        %p151 = pneg %p106
        %s152 = sand.u32 %s96, 1
        %s153 = scalar_lea.sflag [#allocation7], %s152
        %s154 = sand.u32 %s96, 1
        %s155 = smul.addr %s154, 8
        %s156 = scalar_lea.vmem [#allocation6], %s155
        %s157 = smul.u32 %s25, 8
        %v158 = vld [vmem:[%s3] sm:$0x1]
        %v159 = vld [vmem:[%s4] sm:$0x1]
        %s160 = sld [smem:[#allocation5 + %s157]]
        %s161 = scalar_lea.vmem %s1, %s160
        %p163 = scmp.lt.u32.totalorder 1, 8
        %p164 = pneg %p163
        // Predicated region
        $region33: #{tpu_custom_call.1} parent=31 // pred_check
          _
        $region34: #{tpu_custom_call.1} parent=31 // pred_check_branch
          %166 = sbr.rel (%p163) target = $region36
        $region35: #{tpu_custom_call.1} parent=31 // pred_region
          %s182 = sand.u32 1, 7
          %p183 = scmp.eq.s32.totalorder %s182, 0
          %p184 = pneg %p183
          // Predicated region
          $region48: #{tpu_custom_call.1} parent=35 // pred_check
            _
          $region49: #{tpu_custom_call.1} parent=35 // pred_check_branch
            %186 = sbr.rel (%p183) target = $region51
          $region50: #{tpu_custom_call.1} parent=35 // pred_region
            %s187 = sand.u32 1, 7
            %s188 = ssub.s32 1, %s187
            %s189 = scalar_lea.vmem %s161, %s188
            %s190 = ssub.s32 1, %s187
            %s191 = scalar_lea.vmem [#allocation2], %s190
            %s192 = sshll.u32 1, %s187
            %s193 = ssub.s32 %s192, 1
            loop: start=0, step=1, limit=1
            $region52: #{tpu_custom_call.1} parent=50 // loop_pre_header
              _
            $region53: #{tpu_custom_call.1} parent=50 // loop_header
              %s195 = sphi 0, %s199
              %p196 = scmp.ge.s32.totalorder %s195, 1
              %s200 = sphi %s189, %s189
              %s201 = sphi %s191, %s191
            $region54: #{tpu_custom_call.1} parent=50 // loop_header_branch
              %198 = sbr.rel (%p196) target = $region58
            $region55: #{tpu_custom_call.1} parent=50 // loop_body
              %v202 = vld [vmem:[%s200] sm:%s193]
              %203 = vst [vmem:[%s201] sm:%s193] %v202
            $region56: #{tpu_custom_call.1} parent=50 // loop_footer
              %s199 = sadd.s32 1, %s195
            $region57: #{tpu_custom_call.1} parent=50 // loop_footer_branch
              %194 = sbr.rel target = $region53
            $region58: #{tpu_custom_call.1} parent=50 // loop_exit
              _
          $region51: #{tpu_custom_call.1} parent=35 // pred_fallthru
            _
        $region36: #{tpu_custom_call.1} parent=31 // pred_fallthru
          _
        // Predicated region
        $region37: #{tpu_custom_call.1} parent=31 // pred_check
          %p167 = pneg %p163
        $region38: #{tpu_custom_call.1} parent=31 // pred_check_branch
          %169 = sbr.rel (%p167) target = $region40
        $region39: #{tpu_custom_call.1} parent=31 // pred_region
          %s170 = sshll.u32 1, 1
          %s171 = ssub.s32 %s170, 1
          loop: start=0, step=1, limit=1
          $region41: #{tpu_custom_call.1} parent=39 // loop_pre_header
            _
          $region42: #{tpu_custom_call.1} parent=39 // loop_header
            %s173 = sphi 0, %s177
            %p174 = scmp.ge.s32.totalorder %s173, 1
            %s178 = sphi %s161, %s161
            %s179 = sphi [#allocation2], [#allocation2]
          $region43: #{tpu_custom_call.1} parent=39 // loop_header_branch
            %176 = sbr.rel (%p174) target = $region47
          $region44: #{tpu_custom_call.1} parent=39 // loop_body
            %v180 = vld [vmem:[%s178] sm:%s171]
            %181 = vst [vmem:[%s179] sm:%s171] %v180
          $region45: #{tpu_custom_call.1} parent=39 // loop_footer
            %s177 = sadd.s32 1, %s173
          $region46: #{tpu_custom_call.1} parent=39 // loop_footer_branch
            %172 = sbr.rel target = $region42
          $region47: #{tpu_custom_call.1} parent=39 // loop_exit
            _
        $region40: #{tpu_custom_call.1} parent=31 // pred_fallthru
          _
        // Predicated region
        $region59: #{tpu_custom_call.1} parent=31 // pred_check
          _
        $region60: #{tpu_custom_call.1} parent=31 // pred_check_branch
          %206 = sbr.rel (0) target = $region62
        $region61: #{tpu_custom_call.1} parent=31 // pred_region
          %207 = vsyncadd [#allocation3], 16
        $region62: #{tpu_custom_call.1} parent=31 // pred_fallthru
          _
        %s208 = sadd.s32 %s157, 1
        %s209 = sld [smem:[#allocation5 + %s208]]
        %s210 = scalar_lea.vmem %s1, %s209
        %s211 = scalar_lea.vmem [#allocation2], 1
        %p213 = scmp.lt.u32.totalorder 1, 8
        %p214 = pneg %p213
        // Predicated region
        $region63: #{tpu_custom_call.1} parent=31 // pred_check
          _
        $region64: #{tpu_custom_call.1} parent=31 // pred_check_branch
          %216 = sbr.rel (%p213) target = $region66
        $region65: #{tpu_custom_call.1} parent=31 // pred_region
          %s232 = sand.u32 1, 7
          %p233 = scmp.eq.s32.totalorder %s232, 0
          %p234 = pneg %p233
          // Predicated region
          $region78: #{tpu_custom_call.1} parent=65 // pred_check
            _
          $region79: #{tpu_custom_call.1} parent=65 // pred_check_branch
            %236 = sbr.rel (%p233) target = $region81
          $region80: #{tpu_custom_call.1} parent=65 // pred_region
            %s237 = sand.u32 1, 7
            %s238 = ssub.s32 1, %s237
            %s239 = scalar_lea.vmem %s210, %s238
            %s240 = ssub.s32 1, %s237
            %s241 = scalar_lea.vmem %s211, %s240 [#allocation2]
            %s242 = sshll.u32 1, %s237
            %s243 = ssub.s32 %s242, 1
            loop: start=0, step=1, limit=1
            $region82: #{tpu_custom_call.1} parent=80 // loop_pre_header
              _
            $region83: #{tpu_custom_call.1} parent=80 // loop_header
              %s245 = sphi 0, %s249
              %p246 = scmp.ge.s32.totalorder %s245, 1
              %s250 = sphi %s239, %s239
              %s251 = sphi %s241, %s241
            $region84: #{tpu_custom_call.1} parent=80 // loop_header_branch
              %248 = sbr.rel (%p246) target = $region88
            $region85: #{tpu_custom_call.1} parent=80 // loop_body
              %v252 = vld [vmem:[%s250] sm:%s243]
              %253 = vst [vmem:[%s251] sm:%s243] %v252
            $region86: #{tpu_custom_call.1} parent=80 // loop_footer
              %s249 = sadd.s32 1, %s245
            $region87: #{tpu_custom_call.1} parent=80 // loop_footer_branch
              %244 = sbr.rel target = $region83
            $region88: #{tpu_custom_call.1} parent=80 // loop_exit
              _
          $region81: #{tpu_custom_call.1} parent=65 // pred_fallthru
            _
        $region66: #{tpu_custom_call.1} parent=31 // pred_fallthru
          _
        // Predicated region
        $region67: #{tpu_custom_call.1} parent=31 // pred_check
          %p217 = pneg %p213
        $region68: #{tpu_custom_call.1} parent=31 // pred_check_branch
          %219 = sbr.rel (%p217) target = $region70
        $region69: #{tpu_custom_call.1} parent=31 // pred_region
          %s220 = sshll.u32 1, 1
          %s221 = ssub.s32 %s220, 1
          loop: start=0, step=1, limit=1
          $region71: #{tpu_custom_call.1} parent=69 // loop_pre_header
            _
          $region72: #{tpu_custom_call.1} parent=69 // loop_header
            %s223 = sphi 0, %s227
            %p224 = scmp.ge.s32.totalorder %s223, 1
            %s228 = sphi %s210, %s210
            %s229 = sphi %s211, %s211
          $region73: #{tpu_custom_call.1} parent=69 // loop_header_branch
            %226 = sbr.rel (%p224) target = $region77
          $region74: #{tpu_custom_call.1} parent=69 // loop_body
            %v230 = vld [vmem:[%s228] sm:%s221]
            %231 = vst [vmem:[%s229] sm:%s221] %v230
          $region75: #{tpu_custom_call.1} parent=69 // loop_footer
            %s227 = sadd.s32 1, %s223
          $region76: #{tpu_custom_call.1} parent=69 // loop_footer_branch
            %222 = sbr.rel target = $region72
          $region77: #{tpu_custom_call.1} parent=69 // loop_exit
            _
        $region70: #{tpu_custom_call.1} parent=31 // pred_fallthru
          _
        // Predicated region
        $region89: #{tpu_custom_call.1} parent=31 // pred_check
          _
        $region90: #{tpu_custom_call.1} parent=31 // pred_check_branch
          %256 = sbr.rel (0) target = $region92
        $region91: #{tpu_custom_call.1} parent=31 // pred_region
          %257 = vsyncadd [#allocation3], 16
        $region92: #{tpu_custom_call.1} parent=31 // pred_fallthru
          _
        %s258 = sadd.s32 %s157, 2
        %s259 = sld [smem:[#allocation5 + %s258]]
        %s260 = scalar_lea.vmem %s1, %s259
        %s261 = scalar_lea.vmem [#allocation2], 2
        %p263 = scmp.lt.u32.totalorder 1, 8
        %p264 = pneg %p263
        // Predicated region
        $region93: #{tpu_custom_call.1} parent=31 // pred_check
          _
        $region94: #{tpu_custom_call.1} parent=31 // pred_check_branch
          %266 = sbr.rel (%p263) target = $region96
        $region95: #{tpu_custom_call.1} parent=31 // pred_region
          %s282 = sand.u32 1, 7
          %p283 = scmp.eq.s32.totalorder %s282, 0
          %p284 = pneg %p283
          // Predicated region
          $region108: #{tpu_custom_call.1} parent=95 // pred_check
            _
          $region109: #{tpu_custom_call.1} parent=95 // pred_check_branch
            %286 = sbr.rel (%p283) target = $region111
          $region110: #{tpu_custom_call.1} parent=95 // pred_region
            %s287 = sand.u32 1, 7
            %s288 = ssub.s32 1, %s287
            %s289 = scalar_lea.vmem %s260, %s288
            %s290 = ssub.s32 1, %s287
            %s291 = scalar_lea.vmem %s261, %s290 [#allocation2]
            %s292 = sshll.u32 1, %s287
            %s293 = ssub.s32 %s292, 1
            loop: start=0, step=1, limit=1
            $region112: #{tpu_custom_call.1} parent=110 // loop_pre_header
              _
            $region113: #{tpu_custom_call.1} parent=110 // loop_header
              %s295 = sphi 0, %s299
              %p296 = scmp.ge.s32.totalorder %s295, 1
              %s300 = sphi %s289, %s289
              %s301 = sphi %s291, %s291
            $region114: #{tpu_custom_call.1} parent=110 // loop_header_branch
              %298 = sbr.rel (%p296) target = $region118
            $region115: #{tpu_custom_call.1} parent=110 // loop_body
              %v302 = vld [vmem:[%s300] sm:%s293]
              %303 = vst [vmem:[%s301] sm:%s293] %v302
            $region116: #{tpu_custom_call.1} parent=110 // loop_footer
              %s299 = sadd.s32 1, %s295
            $region117: #{tpu_custom_call.1} parent=110 // loop_footer_branch
              %294 = sbr.rel target = $region113
            $region118: #{tpu_custom_call.1} parent=110 // loop_exit
              _
          $region111: #{tpu_custom_call.1} parent=95 // pred_fallthru
            _
        $region96: #{tpu_custom_call.1} parent=31 // pred_fallthru
          _
        // Predicated region
        $region97: #{tpu_custom_call.1} parent=31 // pred_check
          %p267 = pneg %p263
        $region98: #{tpu_custom_call.1} parent=31 // pred_check_branch
          %269 = sbr.rel (%p267) target = $region100
        $region99: #{tpu_custom_call.1} parent=31 // pred_region
          %s270 = sshll.u32 1, 1
          %s271 = ssub.s32 %s270, 1
          loop: start=0, step=1, limit=1
          $region101: #{tpu_custom_call.1} parent=99 // loop_pre_header
            _
          $region102: #{tpu_custom_call.1} parent=99 // loop_header
            %s273 = sphi 0, %s277
            %p274 = scmp.ge.s32.totalorder %s273, 1
            %s278 = sphi %s260, %s260
            %s279 = sphi %s261, %s261
          $region103: #{tpu_custom_call.1} parent=99 // loop_header_branch
            %276 = sbr.rel (%p274) target = $region107
          $region104: #{tpu_custom_call.1} parent=99 // loop_body
            %v280 = vld [vmem:[%s278] sm:%s271]
            %281 = vst [vmem:[%s279] sm:%s271] %v280
          $region105: #{tpu_custom_call.1} parent=99 // loop_footer
            %s277 = sadd.s32 1, %s273
          $region106: #{tpu_custom_call.1} parent=99 // loop_footer_branch
            %272 = sbr.rel target = $region102
          $region107: #{tpu_custom_call.1} parent=99 // loop_exit
            _
        $region100: #{tpu_custom_call.1} parent=31 // pred_fallthru
          _
        // Predicated region
        $region119: #{tpu_custom_call.1} parent=31 // pred_check
          _
        $region120: #{tpu_custom_call.1} parent=31 // pred_check_branch
          %306 = sbr.rel (0) target = $region122
        $region121: #{tpu_custom_call.1} parent=31 // pred_region
          %307 = vsyncadd [#allocation3], 16
        $region122: #{tpu_custom_call.1} parent=31 // pred_fallthru
          _
        %s308 = sadd.s32 %s157, 3
        %s309 = sld [smem:[#allocation5 + %s308]]
        %s310 = scalar_lea.vmem %s1, %s309
        %s311 = scalar_lea.vmem [#allocation2], 3
        %p313 = scmp.lt.u32.totalorder 1, 8
        %p314 = pneg %p313
        // Predicated region
        $region123: #{tpu_custom_call.1} parent=31 // pred_check
          _
        $region124: #{tpu_custom_call.1} parent=31 // pred_check_branch
          %316 = sbr.rel (%p313) target = $region126
        $region125: #{tpu_custom_call.1} parent=31 // pred_region
          %s332 = sand.u32 1, 7
          %p333 = scmp.eq.s32.totalorder %s332, 0
          %p334 = pneg %p333
          // Predicated region
          $region138: #{tpu_custom_call.1} parent=125 // pred_check
            _
          $region139: #{tpu_custom_call.1} parent=125 // pred_check_branch
            %336 = sbr.rel (%p333) target = $region141
          $region140: #{tpu_custom_call.1} parent=125 // pred_region
            %s337 = sand.u32 1, 7
            %s338 = ssub.s32 1, %s337
            %s339 = scalar_lea.vmem %s310, %s338
            %s340 = ssub.s32 1, %s337
            %s341 = scalar_lea.vmem %s311, %s340 [#allocation2]
            %s342 = sshll.u32 1, %s337
            %s343 = ssub.s32 %s342, 1
            loop: start=0, step=1, limit=1
            $region142: #{tpu_custom_call.1} parent=140 // loop_pre_header
              _
            $region143: #{tpu_custom_call.1} parent=140 // loop_header
              %s345 = sphi 0, %s349
              %p346 = scmp.ge.s32.totalorder %s345, 1
              %s350 = sphi %s339, %s339
              %s351 = sphi %s341, %s341
            $region144: #{tpu_custom_call.1} parent=140 // loop_header_branch
              %348 = sbr.rel (%p346) target = $region148
            $region145: #{tpu_custom_call.1} parent=140 // loop_body
              %v352 = vld [vmem:[%s350] sm:%s343]
              %353 = vst [vmem:[%s351] sm:%s343] %v352
            $region146: #{tpu_custom_call.1} parent=140 // loop_footer
              %s349 = sadd.s32 1, %s345
            $region147: #{tpu_custom_call.1} parent=140 // loop_footer_branch
              %344 = sbr.rel target = $region143
            $region148: #{tpu_custom_call.1} parent=140 // loop_exit
              _
          $region141: #{tpu_custom_call.1} parent=125 // pred_fallthru
            _
        $region126: #{tpu_custom_call.1} parent=31 // pred_fallthru
          _
        // Predicated region
        $region127: #{tpu_custom_call.1} parent=31 // pred_check
          %p317 = pneg %p313
        $region128: #{tpu_custom_call.1} parent=31 // pred_check_branch
          %319 = sbr.rel (%p317) target = $region130
        $region129: #{tpu_custom_call.1} parent=31 // pred_region
          %s320 = sshll.u32 1, 1
          %s321 = ssub.s32 %s320, 1
          loop: start=0, step=1, limit=1
          $region131: #{tpu_custom_call.1} parent=129 // loop_pre_header
            _
          $region132: #{tpu_custom_call.1} parent=129 // loop_header
            %s323 = sphi 0, %s327
            %p324 = scmp.ge.s32.totalorder %s323, 1
            %s328 = sphi %s310, %s310
            %s329 = sphi %s311, %s311
          $region133: #{tpu_custom_call.1} parent=129 // loop_header_branch
            %326 = sbr.rel (%p324) target = $region137
          $region134: #{tpu_custom_call.1} parent=129 // loop_body
            %v330 = vld [vmem:[%s328] sm:%s321]
            %331 = vst [vmem:[%s329] sm:%s321] %v330
          $region135: #{tpu_custom_call.1} parent=129 // loop_footer
            %s327 = sadd.s32 1, %s323
          $region136: #{tpu_custom_call.1} parent=129 // loop_footer_branch
            %322 = sbr.rel target = $region132
          $region137: #{tpu_custom_call.1} parent=129 // loop_exit
            _
        $region130: #{tpu_custom_call.1} parent=31 // pred_fallthru
          _
        // Predicated region
        $region149: #{tpu_custom_call.1} parent=31 // pred_check
          _
        $region150: #{tpu_custom_call.1} parent=31 // pred_check_branch
          %356 = sbr.rel (0) target = $region152
        $region151: #{tpu_custom_call.1} parent=31 // pred_region
          %357 = vsyncadd [#allocation3], 16
        $region152: #{tpu_custom_call.1} parent=31 // pred_fallthru
          _
        %s358 = sadd.s32 %s157, 4
        %s359 = sld [smem:[#allocation5 + %s358]]
        %s360 = scalar_lea.vmem %s1, %s359
        %s361 = scalar_lea.vmem [#allocation2], 4
        %p363 = scmp.lt.u32.totalorder 1, 8
        %p364 = pneg %p363
        // Predicated region
        $region153: #{tpu_custom_call.1} parent=31 // pred_check
          _
        $region154: #{tpu_custom_call.1} parent=31 // pred_check_branch
          %366 = sbr.rel (%p363) target = $region156
        $region155: #{tpu_custom_call.1} parent=31 // pred_region
          %s382 = sand.u32 1, 7
          %p383 = scmp.eq.s32.totalorder %s382, 0
          %p384 = pneg %p383
          // Predicated region
          $region168: #{tpu_custom_call.1} parent=155 // pred_check
            _
          $region169: #{tpu_custom_call.1} parent=155 // pred_check_branch
            %386 = sbr.rel (%p383) target = $region171
          $region170: #{tpu_custom_call.1} parent=155 // pred_region
            %s387 = sand.u32 1, 7
            %s388 = ssub.s32 1, %s387
            %s389 = scalar_lea.vmem %s360, %s388
            %s390 = ssub.s32 1, %s387
            %s391 = scalar_lea.vmem %s361, %s390 [#allocation2]
            %s392 = sshll.u32 1, %s387
            %s393 = ssub.s32 %s392, 1
            loop: start=0, step=1, limit=1
            $region172: #{tpu_custom_call.1} parent=170 // loop_pre_header
              _
            $region173: #{tpu_custom_call.1} parent=170 // loop_header
              %s395 = sphi 0, %s399
              %p396 = scmp.ge.s32.totalorder %s395, 1
              %s400 = sphi %s389, %s389
              %s401 = sphi %s391, %s391
            $region174: #{tpu_custom_call.1} parent=170 // loop_header_branch
              %398 = sbr.rel (%p396) target = $region178
            $region175: #{tpu_custom_call.1} parent=170 // loop_body
              %v402 = vld [vmem:[%s400] sm:%s393]
              %403 = vst [vmem:[%s401] sm:%s393] %v402
            $region176: #{tpu_custom_call.1} parent=170 // loop_footer
              %s399 = sadd.s32 1, %s395
            $region177: #{tpu_custom_call.1} parent=170 // loop_footer_branch
              %394 = sbr.rel target = $region173
            $region178: #{tpu_custom_call.1} parent=170 // loop_exit
              _
          $region171: #{tpu_custom_call.1} parent=155 // pred_fallthru
            _
        $region156: #{tpu_custom_call.1} parent=31 // pred_fallthru
          _
        // Predicated region
        $region157: #{tpu_custom_call.1} parent=31 // pred_check
          %p367 = pneg %p363
        $region158: #{tpu_custom_call.1} parent=31 // pred_check_branch
          %369 = sbr.rel (%p367) target = $region160
        $region159: #{tpu_custom_call.1} parent=31 // pred_region
          %s370 = sshll.u32 1, 1
          %s371 = ssub.s32 %s370, 1
          loop: start=0, step=1, limit=1
          $region161: #{tpu_custom_call.1} parent=159 // loop_pre_header
            _
          $region162: #{tpu_custom_call.1} parent=159 // loop_header
            %s373 = sphi 0, %s377
            %p374 = scmp.ge.s32.totalorder %s373, 1
            %s378 = sphi %s360, %s360
            %s379 = sphi %s361, %s361
          $region163: #{tpu_custom_call.1} parent=159 // loop_header_branch
            %376 = sbr.rel (%p374) target = $region167
          $region164: #{tpu_custom_call.1} parent=159 // loop_body
            %v380 = vld [vmem:[%s378] sm:%s371]
            %381 = vst [vmem:[%s379] sm:%s371] %v380
          $region165: #{tpu_custom_call.1} parent=159 // loop_footer
            %s377 = sadd.s32 1, %s373
          $region166: #{tpu_custom_call.1} parent=159 // loop_footer_branch
            %372 = sbr.rel target = $region162
          $region167: #{tpu_custom_call.1} parent=159 // loop_exit
            _
        $region160: #{tpu_custom_call.1} parent=31 // pred_fallthru
          _
        // Predicated region
        $region179: #{tpu_custom_call.1} parent=31 // pred_check
          _
        $region180: #{tpu_custom_call.1} parent=31 // pred_check_branch
          %406 = sbr.rel (0) target = $region182
        $region181: #{tpu_custom_call.1} parent=31 // pred_region
          %407 = vsyncadd [#allocation3], 16
        $region182: #{tpu_custom_call.1} parent=31 // pred_fallthru
          _
        %s408 = sadd.s32 %s157, 5
        %s409 = sld [smem:[#allocation5 + %s408]]
        %s410 = scalar_lea.vmem %s1, %s409
        %s411 = scalar_lea.vmem [#allocation2], 5
        %p413 = scmp.lt.u32.totalorder 1, 8
        %p414 = pneg %p413
        // Predicated region
        $region183: #{tpu_custom_call.1} parent=31 // pred_check
          _
        $region184: #{tpu_custom_call.1} parent=31 // pred_check_branch
          %416 = sbr.rel (%p413) target = $region186
        $region185: #{tpu_custom_call.1} parent=31 // pred_region
          %s432 = sand.u32 1, 7
          %p433 = scmp.eq.s32.totalorder %s432, 0
          %p434 = pneg %p433
          // Predicated region
          $region198: #{tpu_custom_call.1} parent=185 // pred_check
            _
          $region199: #{tpu_custom_call.1} parent=185 // pred_check_branch
            %436 = sbr.rel (%p433) target = $region201
          $region200: #{tpu_custom_call.1} parent=185 // pred_region
            %s437 = sand.u32 1, 7
            %s438 = ssub.s32 1, %s437
            %s439 = scalar_lea.vmem %s410, %s438
            %s440 = ssub.s32 1, %s437
            %s441 = scalar_lea.vmem %s411, %s440 [#allocation2]
            %s442 = sshll.u32 1, %s437
            %s443 = ssub.s32 %s442, 1
            loop: start=0, step=1, limit=1
            $region202: #{tpu_custom_call.1} parent=200 // loop_pre_header
              _
            $region203: #{tpu_custom_call.1} parent=200 // loop_header
              %s445 = sphi 0, %s449
              %p446 = scmp.ge.s32.totalorder %s445, 1
              %s450 = sphi %s439, %s439
              %s451 = sphi %s441, %s441
            $region204: #{tpu_custom_call.1} parent=200 // loop_header_branch
              %448 = sbr.rel (%p446) target = $region208
            $region205: #{tpu_custom_call.1} parent=200 // loop_body
              %v452 = vld [vmem:[%s450] sm:%s443]
              %453 = vst [vmem:[%s451] sm:%s443] %v452
            $region206: #{tpu_custom_call.1} parent=200 // loop_footer
              %s449 = sadd.s32 1, %s445
            $region207: #{tpu_custom_call.1} parent=200 // loop_footer_branch
              %444 = sbr.rel target = $region203
            $region208: #{tpu_custom_call.1} parent=200 // loop_exit
              _
          $region201: #{tpu_custom_call.1} parent=185 // pred_fallthru
            _
        $region186: #{tpu_custom_call.1} parent=31 // pred_fallthru
          _
        // Predicated region
        $region187: #{tpu_custom_call.1} parent=31 // pred_check
          %p417 = pneg %p413
        $region188: #{tpu_custom_call.1} parent=31 // pred_check_branch
          %419 = sbr.rel (%p417) target = $region190
        $region189: #{tpu_custom_call.1} parent=31 // pred_region
          %s420 = sshll.u32 1, 1
          %s421 = ssub.s32 %s420, 1
          loop: start=0, step=1, limit=1
          $region191: #{tpu_custom_call.1} parent=189 // loop_pre_header
            _
          $region192: #{tpu_custom_call.1} parent=189 // loop_header
            %s423 = sphi 0, %s427
            %p424 = scmp.ge.s32.totalorder %s423, 1
            %s428 = sphi %s410, %s410
            %s429 = sphi %s411, %s411
          $region193: #{tpu_custom_call.1} parent=189 // loop_header_branch
            %426 = sbr.rel (%p424) target = $region197
          $region194: #{tpu_custom_call.1} parent=189 // loop_body
            %v430 = vld [vmem:[%s428] sm:%s421]
            %431 = vst [vmem:[%s429] sm:%s421] %v430
          $region195: #{tpu_custom_call.1} parent=189 // loop_footer
            %s427 = sadd.s32 1, %s423
          $region196: #{tpu_custom_call.1} parent=189 // loop_footer_branch
            %422 = sbr.rel target = $region192
          $region197: #{tpu_custom_call.1} parent=189 // loop_exit
            _
        $region190: #{tpu_custom_call.1} parent=31 // pred_fallthru
          _
        // Predicated region
        $region209: #{tpu_custom_call.1} parent=31 // pred_check
          _
        $region210: #{tpu_custom_call.1} parent=31 // pred_check_branch
          %456 = sbr.rel (0) target = $region212
        $region211: #{tpu_custom_call.1} parent=31 // pred_region
          %457 = vsyncadd [#allocation3], 16
        $region212: #{tpu_custom_call.1} parent=31 // pred_fallthru
          _
        %s458 = sadd.s32 %s157, 6
        %s459 = sld [smem:[#allocation5 + %s458]]
        %s460 = scalar_lea.vmem %s1, %s459
        %s461 = scalar_lea.vmem [#allocation2], 6
        %p463 = scmp.lt.u32.totalorder 1, 8
        %p464 = pneg %p463
        // Predicated region
        $region213: #{tpu_custom_call.1} parent=31 // pred_check
          _
        $region214: #{tpu_custom_call.1} parent=31 // pred_check_branch
          %466 = sbr.rel (%p463) target = $region216
        $region215: #{tpu_custom_call.1} parent=31 // pred_region
          %s482 = sand.u32 1, 7
          %p483 = scmp.eq.s32.totalorder %s482, 0
          %p484 = pneg %p483
          // Predicated region
          $region228: #{tpu_custom_call.1} parent=215 // pred_check
            _
          $region229: #{tpu_custom_call.1} parent=215 // pred_check_branch
            %486 = sbr.rel (%p483) target = $region231
          $region230: #{tpu_custom_call.1} parent=215 // pred_region
            %s487 = sand.u32 1, 7
            %s488 = ssub.s32 1, %s487
            %s489 = scalar_lea.vmem %s460, %s488
            %s490 = ssub.s32 1, %s487
            %s491 = scalar_lea.vmem %s461, %s490 [#allocation2]
            %s492 = sshll.u32 1, %s487
            %s493 = ssub.s32 %s492, 1
            loop: start=0, step=1, limit=1
            $region232: #{tpu_custom_call.1} parent=230 // loop_pre_header
              _
            $region233: #{tpu_custom_call.1} parent=230 // loop_header
              %s495 = sphi 0, %s499
              %p496 = scmp.ge.s32.totalorder %s495, 1
              %s500 = sphi %s489, %s489
              %s501 = sphi %s491, %s491
            $region234: #{tpu_custom_call.1} parent=230 // loop_header_branch
              %498 = sbr.rel (%p496) target = $region238
            $region235: #{tpu_custom_call.1} parent=230 // loop_body
              %v502 = vld [vmem:[%s500] sm:%s493]
              %503 = vst [vmem:[%s501] sm:%s493] %v502
            $region236: #{tpu_custom_call.1} parent=230 // loop_footer
              %s499 = sadd.s32 1, %s495
            $region237: #{tpu_custom_call.1} parent=230 // loop_footer_branch
              %494 = sbr.rel target = $region233
            $region238: #{tpu_custom_call.1} parent=230 // loop_exit
              _
          $region231: #{tpu_custom_call.1} parent=215 // pred_fallthru
            _
        $region216: #{tpu_custom_call.1} parent=31 // pred_fallthru
          _
        // Predicated region
        $region217: #{tpu_custom_call.1} parent=31 // pred_check
          %p467 = pneg %p463
        $region218: #{tpu_custom_call.1} parent=31 // pred_check_branch
          %469 = sbr.rel (%p467) target = $region220
        $region219: #{tpu_custom_call.1} parent=31 // pred_region
          %s470 = sshll.u32 1, 1
          %s471 = ssub.s32 %s470, 1
          loop: start=0, step=1, limit=1
          $region221: #{tpu_custom_call.1} parent=219 // loop_pre_header
            _
          $region222: #{tpu_custom_call.1} parent=219 // loop_header
            %s473 = sphi 0, %s477
            %p474 = scmp.ge.s32.totalorder %s473, 1
            %s478 = sphi %s460, %s460
            %s479 = sphi %s461, %s461
          $region223: #{tpu_custom_call.1} parent=219 // loop_header_branch
            %476 = sbr.rel (%p474) target = $region227
          $region224: #{tpu_custom_call.1} parent=219 // loop_body
            %v480 = vld [vmem:[%s478] sm:%s471]
            %481 = vst [vmem:[%s479] sm:%s471] %v480
          $region225: #{tpu_custom_call.1} parent=219 // loop_footer
            %s477 = sadd.s32 1, %s473
          $region226: #{tpu_custom_call.1} parent=219 // loop_footer_branch
            %472 = sbr.rel target = $region222
          $region227: #{tpu_custom_call.1} parent=219 // loop_exit
            _
        $region220: #{tpu_custom_call.1} parent=31 // pred_fallthru
          _
        // Predicated region
        $region239: #{tpu_custom_call.1} parent=31 // pred_check
          _
        $region240: #{tpu_custom_call.1} parent=31 // pred_check_branch
          %506 = sbr.rel (0) target = $region242
        $region241: #{tpu_custom_call.1} parent=31 // pred_region
          %507 = vsyncadd [#allocation3], 16
        $region242: #{tpu_custom_call.1} parent=31 // pred_fallthru
          _
        %s508 = sadd.s32 %s157, 7
        %s509 = sld [smem:[#allocation5 + %s508]]
        %s510 = scalar_lea.vmem %s1, %s509
        %s511 = scalar_lea.vmem [#allocation2], 7
        %p513 = scmp.lt.u32.totalorder 1, 8
        %p514 = pneg %p513
        // Predicated region
        $region243: #{tpu_custom_call.1} parent=31 // pred_check
          _
        $region244: #{tpu_custom_call.1} parent=31 // pred_check_branch
          %516 = sbr.rel (%p513) target = $region246
        $region245: #{tpu_custom_call.1} parent=31 // pred_region
          %s532 = sand.u32 1, 7
          %p533 = scmp.eq.s32.totalorder %s532, 0
          %p534 = pneg %p533
          // Predicated region
          $region258: #{tpu_custom_call.1} parent=245 // pred_check
            _
          $region259: #{tpu_custom_call.1} parent=245 // pred_check_branch
            %536 = sbr.rel (%p533) target = $region261
          $region260: #{tpu_custom_call.1} parent=245 // pred_region
            %s537 = sand.u32 1, 7
            %s538 = ssub.s32 1, %s537
            %s539 = scalar_lea.vmem %s510, %s538
            %s540 = ssub.s32 1, %s537
            %s541 = scalar_lea.vmem %s511, %s540 [#allocation2]
            %s542 = sshll.u32 1, %s537
            %s543 = ssub.s32 %s542, 1
            loop: start=0, step=1, limit=1
            $region262: #{tpu_custom_call.1} parent=260 // loop_pre_header
              _
            $region263: #{tpu_custom_call.1} parent=260 // loop_header
              %s545 = sphi 0, %s549
              %p546 = scmp.ge.s32.totalorder %s545, 1
              %s550 = sphi %s539, %s539
              %s551 = sphi %s541, %s541
            $region264: #{tpu_custom_call.1} parent=260 // loop_header_branch
              %548 = sbr.rel (%p546) target = $region268
            $region265: #{tpu_custom_call.1} parent=260 // loop_body
              %v552 = vld [vmem:[%s550] sm:%s543]
              %553 = vst [vmem:[%s551] sm:%s543] %v552
            $region266: #{tpu_custom_call.1} parent=260 // loop_footer
              %s549 = sadd.s32 1, %s545
            $region267: #{tpu_custom_call.1} parent=260 // loop_footer_branch
              %544 = sbr.rel target = $region263
            $region268: #{tpu_custom_call.1} parent=260 // loop_exit
              _
          $region261: #{tpu_custom_call.1} parent=245 // pred_fallthru
            _
        $region246: #{tpu_custom_call.1} parent=31 // pred_fallthru
          _
        // Predicated region
        $region247: #{tpu_custom_call.1} parent=31 // pred_check
          %p517 = pneg %p513
        $region248: #{tpu_custom_call.1} parent=31 // pred_check_branch
          %519 = sbr.rel (%p517) target = $region250
        $region249: #{tpu_custom_call.1} parent=31 // pred_region
          %s520 = sshll.u32 1, 1
          %s521 = ssub.s32 %s520, 1
          loop: start=0, step=1, limit=1
          $region251: #{tpu_custom_call.1} parent=249 // loop_pre_header
            _
          $region252: #{tpu_custom_call.1} parent=249 // loop_header
            %s523 = sphi 0, %s527
            %p524 = scmp.ge.s32.totalorder %s523, 1
            %s528 = sphi %s510, %s510
            %s529 = sphi %s511, %s511
          $region253: #{tpu_custom_call.1} parent=249 // loop_header_branch
            %526 = sbr.rel (%p524) target = $region257
          $region254: #{tpu_custom_call.1} parent=249 // loop_body
            %v530 = vld [vmem:[%s528] sm:%s521]
            %531 = vst [vmem:[%s529] sm:%s521] %v530
          $region255: #{tpu_custom_call.1} parent=249 // loop_footer
            %s527 = sadd.s32 1, %s523
          $region256: #{tpu_custom_call.1} parent=249 // loop_footer_branch
            %522 = sbr.rel target = $region252
          $region257: #{tpu_custom_call.1} parent=249 // loop_exit
            _
        $region250: #{tpu_custom_call.1} parent=31 // pred_fallthru
          _
        // Predicated region
        $region269: #{tpu_custom_call.1} parent=31 // pred_check
          _
        $region270: #{tpu_custom_call.1} parent=31 // pred_check_branch
          %556 = sbr.rel (0) target = $region272
        $region271: #{tpu_custom_call.1} parent=31 // pred_region
          %557 = vsyncadd [#allocation3], 16
        $region272: #{tpu_custom_call.1} parent=31 // pred_fallthru
          _
        %s558 = smul.u32 8, 1
        %s559 = sshll.u32 %s558, 4
        %560 = dma.done [#allocation3], %s559
        %v561 = vld [vmem:[#allocation2] sm:$0xff]
        %v562 = vld [vmem:[%s2] sm:$0xff]
        %v563 = vadd.f32 %v561, %v562
        %vm564 = vcmask 261120
        %v565 = vsel %vm564, %v563, 0.0
        %566 = vadd.xlane.f32.xlu0 %v565
        %v567 = vpop.xlane.xlu0 %566
        %v568 = vrcp.pop 32.0
        %v569 = vmul.f32 %v567, %v568
        %v570 = vsub.f32 %v563, %v569
        %v571 = vmul.f32 %v570, %v570
        %v572 = vsel %vm564, %v571, 0.0
        %573 = vadd.xlane.f32.xlu0 %v572
        %v574 = vpop.xlane.xlu0 %573
        %v575 = vmul.f32 %v574, %v568
        %v576 = vadd.f32 %v575, 1e-12
        %v577 = vrsqrt.pop %v576
        %v578 = vmul.f32 %v570, %v577
        %v580 = vlaneseq
        %v581 = vshrl.u32 %v580, 7
        %v582 = vsub.s32 0, %v581
        %v583 = vrot.slane %v158, %v582
        %v585 = vmul.f32 %v578, %v583
        %v587 = vlaneseq
        %v588 = vshrl.u32 %v587, 7
        %v589 = vsub.s32 0, %v588
        %v590 = vrot.slane %v159, %v589
        %v592 = vadd.f32 %v585, %v590
        %593 = vst.msk [vmem:[%s156] sm:$0xff] %vm564, %v592
        %s594 = sand.u32 %s96, 1
        %s595 = scalar_lea.sflag [#allocation7], %s594
        %s596 = sand.u32 %s96, 1
        %s597 = smul.addr %s596, 8
        %s598 = scalar_lea.vmem [#allocation6], %s597
        // Predicated region
        $region273: #{tpu_custom_call.1} parent=31 // pred_check
          %p599 = pneg %p106
        $region274: #{tpu_custom_call.1} parent=31 // pred_check_branch
          %601 = sbr.rel (%p599) target = $region276
        $region275: #{tpu_custom_call.1} parent=31 // pred_region
          %s603 = ssub.s32 128, 128
          %604 = vsyncadd %s595, %s603
          %s605 = smul.addr %s25, 128
          %s606 = scalar_lea.hbm %s5, %s605
          %s608 = sshll.u32 %s598, 4
          %s609 = int_to_ptr.vmem [resolvable:$true] %s608
          %611 = dma.vmem_to_hbm [thread:$0]  %s609, 128, %s606, %s595
        $region276: #{tpu_custom_call.1} parent=31 // pred_fallthru
          _
      $region32: #{tpu_custom_call.1} parent=5 // pred_fallthru
        _
      %p612 = scmp.le.s32.totalorder 2, %s20
      // Predicated region
      $region277: #{tpu_custom_call.1} parent=5 // pred_check
        %p613 = pneg %p612
      $region278: #{tpu_custom_call.1} parent=5 // pred_check_branch
        %615 = sbr.rel (%p613) target = $region280
      $region279: #{tpu_custom_call.1} parent=5 // pred_region
        %s616 = ssub.s32 %s20, 2
        // Predicated region
        $region281: #{tpu_custom_call.1} parent=279 // pred_check
          %p617 = pneg %p112
        $region282: #{tpu_custom_call.1} parent=279 // pred_check_branch
          %619 = sbr.rel (%p617) target = $region284
        $region283: #{tpu_custom_call.1} parent=279 // pred_region
          %s620 = sand.u32 %s97, 1
          %s621 = scalar_lea.sflag [#allocation7], %s620
          %s622 = sand.u32 %s97, 1
          %s623 = smul.addr %s622, 8
          %s624 = scalar_lea.vmem [#allocation6], %s623
          %625 = dma.done %s621, 128
        $region284: #{tpu_custom_call.1} parent=279 // pred_fallthru
          _
      $region280: #{tpu_custom_call.1} parent=5 // pred_fallthru
        _
    $region6: #{tpu_custom_call.1} parent=1 // loop_footer
      %s24 = sadd.s32 1, %s20
    $region7: #{tpu_custom_call.1} parent=1 // loop_footer_branch
      %19 = sbr.rel target = $region3
    $region8: #{tpu_custom_call.1} parent=1 // loop_exit
      _
    %626 = vsyncpa [#allocation7], 1
    %s627 = scalar_lea.sflag [#allocation7], 1
    %628 = vsyncpa %s627, 1
  %629 = vsyncmov [#allocation3]
  %s630 = vpop.sfrf %629
  %p631 = scmp.eq.s32.totalorder %s630, 0
  %p632 = pneg %p631
  %634 = shalt.err (%p632)
  %s635 = scalar_lea.sflag [#allocation3], 1
  %636 = vsyncmov %s635
  %s637 = vpop.sfrf %636
  %p638 = scmp.eq.s32.totalorder %s637, 0
  %p639 = pneg %p638
  %641 = shalt.err (%p639)

</llo_original>
